<compile_context>
chip_gen: v7x
topology: tpu7x:2x2x1
jax: 0.10.0
libtpu: 0.0.40
codegen_flags: <defaults>
</compile_context>

<pallas_src>
import functools

import jax
import jax.numpy as jnp
from jax import lax
from jax.experimental import pallas as pl
from jax.experimental.pallas import tpu as pltpu

_LN_EPS = 1e-5  # PyTorch nn.LayerNorm default


def _patch_merging_kernel(x_ref, w_ref, b_ref, o_ref):
    # x_ref: (rblk, 2, W2, 2C)   rows = (batch, h/2) groups; dim1 = even/odd row
    # w_ref: (4C, 2C)            reduction weight with LN gamma folded in
    # b_ref: (1, 2C)             beta @ W  (folded LN shift)
    # o_ref: (rblk*W2, 2C)
    rblk, _, w2, c2 = x_ref.shape
    m = rblk * w2

    xv = x_ref[...]
    even = xv[:, 0].reshape(m, c2)        # features [x0 | x2]
    odd = xv[:, 1].reshape(m, c2)         # features [x1 | x3]
    # (m, 4C) in kernel order [x0, x2, x1, x3]; lane-concat at a 128 boundary.
    cat = jnp.concatenate([even, odd], axis=-1).astype(jnp.float32)

    # LayerNorm statistics over the 4C features (biased variance, eps=1e-5).
    mu = jnp.mean(cat, axis=-1, keepdims=True)
    xc = cat - mu
    var = jnp.mean(xc * xc, axis=-1, keepdims=True)
    xhat = xc * lax.rsqrt(var + _LN_EPS)

    # Single MXU matmul (m, 4C) @ (4C, 2C); gamma is folded into w, beta@W is
    # the bias.  Linear itself has no bias.
    wv = w_ref[...]
    out = jnp.dot(xhat.astype(wv.dtype), wv, preferred_element_type=jnp.float32)
    out = out + b_ref[...].astype(jnp.float32)
    o_ref[...] = out.astype(o_ref.dtype)


def _pick_row_block(rows, bytes_per_row):
    """Largest power-of-two-friendly divisor: >=2 grid steps when possible,
    block input bytes capped at ~1 MiB (double-buffered by Pallas)."""
    rblk = rows
    if rows % 2 == 0 and rows >= 2:
        rblk = rows // 2
    while rblk % 2 == 0 and rblk * bytes_per_row > (1 << 20):
        rblk //= 2
    return max(rblk, 1)


@functools.partial(jax.jit, static_argnames=("input_resolution",))
def patch_merging_forward(x, gamma, beta, weight, *, input_resolution):
    """x: (B, H*W, C); gamma/beta: (4C,); weight: (2C, 4C) (PyTorch nn.Linear)."""
    H, W = input_resolution
    B, L, C = x.shape
    assert L == H * W, "input feature has wrong size"
    assert H % 2 == 0 and W % 2 == 0, "H and W must be even"
    H2, W2 = H // 2, W // 2
    C2, C4 = 2 * C, 4 * C

    # Kernel feature order is [x0, x2, x1, x3]; permute & fold the tiny params
    # once here instead of touching activations in the kernel.
    perm = jnp.array([0, 2, 1, 3], jnp.int32)
    w_t = weight.T                                        # (4C, 2C)
    w_k = (gamma[:, None] * w_t).reshape(4, C, C2)[perm].reshape(C4, C2)
    b_k = (beta @ w_t).reshape(1, C2)                     # permutation invariant

    # Free row-major view: (b, h2, hr, w2, wr, c) -> (b*h2, hr, w2, wr*c).
    rows = B * H2
    x_k = x.reshape(rows, 2, W2, C2)

    bytes_per_row = 2 * W2 * C2 * x.dtype.itemsize
    rblk = _pick_row_block(rows, bytes_per_row)
    g = rows // rblk
    assert g * rblk == rows

    out = pl.pallas_call(
        _patch_merging_kernel,
        out_shape=jax.ShapeDtypeStruct((rows * W2, C2), x.dtype),
        grid_spec=pltpu.PrefetchScalarGridSpec(
            num_scalar_prefetch=0,
            grid=(g,),
            in_specs=[
                pl.BlockSpec((rblk, 2, W2, C2), lambda i: (i, 0, 0, 0)),
                pl.BlockSpec((C4, C2), lambda i: (0, 0)),
                pl.BlockSpec((1, C2), lambda i: (0, 0)),
            ],
            out_specs=pl.BlockSpec((rblk * W2, C2), lambda i: (i, 0)),
        ),
        compiler_params=pltpu.CompilerParams(
            dimension_semantics=("parallel",)),
    )(x_k, w_k, b_k)

    return out.reshape(B, H2 * W2, C2)   # free view


def patch_merging_reference(x, gamma, beta, weight, input_resolution):
    # Pure-JAX reference mirroring the PyTorch module exactly.
    H, W = input_resolution
    B, L, C = x.shape
    xv = x.reshape(B, H, W, C)
    x0 = xv[:, 0::2, 0::2, :]
    x1 = xv[:, 1::2, 0::2, :]
    x2 = xv[:, 0::2, 1::2, :]
    x3 = xv[:, 1::2, 1::2, :]
    cat = jnp.concatenate([x0, x1, x2, x3], axis=-1).reshape(B, -1, 4 * C)
    mu = jnp.mean(cat, axis=-1, keepdims=True)
    var = jnp.mean((cat - mu) ** 2, axis=-1, keepdims=True)
    y = (cat - mu) / jnp.sqrt(var + _LN_EPS) * gamma + beta
    return jnp.einsum("blk,nk->bln", y, weight)


if __name__ == "__main__":
    key = jax.random.PRNGKey(0)
    B, dim, H, W = 2, 64, 16, 16      # 2*dim = 128 -> lane-dense output stores

    k_x, k_g, k_b, k_w = jax.random.split(key, 4)
    x = jax.random.normal(k_x, (B, H * W, dim), jnp.float32)
    gamma = 1.0 + 0.1 * jax.random.normal(k_g, (4 * dim,), jnp.float32)
    beta = 0.1 * jax.random.normal(k_b, (4 * dim,), jnp.float32)
    weight = jax.random.normal(k_w, (2 * dim, 4 * dim), jnp.float32) / jnp.sqrt(4.0 * dim)

    out = jax.block_until_ready(
        patch_merging_forward(x, gamma, beta, weight, input_resolution=(H, W)))
    ref = jax.block_until_ready(
        patch_merging_reference(x, gamma, beta, weight, (H, W)))

    assert out.shape == (B, (H // 2) * (W // 2), 2 * dim), out.shape
    rel_err = float(jnp.max(jnp.abs(out - ref)) / (jnp.max(jnp.abs(ref)) + 1e-8))
    assert rel_err < 1e-3, f"mismatch: rel_err={rel_err}"
    print("KERNEL_OK")
</pallas_src>

<mosaic_0001>
module attributes {stable_mosaic.version = 11 : i64} {
  func.func @_patch_merging_kernel(%arg0: i32, %arg1: memref<8x2x8x128xf32, #tpu.memory_space<vmem>>, %arg2: memref<256x128xf32, #tpu.memory_space<vmem>>, %arg3: memref<1x128xf32, #tpu.memory_space<vmem>>, %arg4: memref<64x128xf32, #tpu.memory_space<vmem>>) attributes {dimension_semantics = [#tpu.dimension_semantics<parallel>], iteration_bounds = array<i64: 2>, scalar_prefetch = 0 : i64, scratch_operands = 0 : i64, tpu.core_type = #tpu.core_type<tc>, window_params = [{transform_indices = @transform_0, window_bounds = array<i64: 8, 2, 8, 128>}, {pipeline_mode = #tpu.pipeline_mode<synchronous>, transform_indices = @transform_1, window_bounds = array<i64: 256, 128>}, {pipeline_mode = #tpu.pipeline_mode<synchronous>, transform_indices = @transform_2, window_bounds = array<i64: 1, 128>}, {transform_indices = @transform_3, window_bounds = array<i64: 64, 128>}]} {
    %c0 = arith.constant 0 : index
    %c0_0 = arith.constant 0 : index
    %c0_1 = arith.constant 0 : index
    %c0_2 = arith.constant 0 : index
    %0 = vector.load %arg1[%c0, %c0_0, %c0_1, %c0_2] : memref<8x2x8x128xf32, #tpu.memory_space<vmem>>, vector<8x2x8x128xf32>
    %1 = vector.extract_strided_slice %0 {offsets = [0, 0, 0, 0], sizes = [8, 1, 8, 128], strides = [1, 1, 1, 1]} : vector<8x2x8x128xf32> to vector<8x1x8x128xf32>
    %2 = vector.shape_cast %1 : vector<8x1x8x128xf32> to vector<8x8x128xf32>
    %3 = vector.shape_cast %2 : vector<8x8x128xf32> to vector<64x128xf32>
    %4 = vector.extract_strided_slice %0 {offsets = [0, 1, 0, 0], sizes = [8, 1, 8, 128], strides = [1, 1, 1, 1]} : vector<8x2x8x128xf32> to vector<8x1x8x128xf32>
    %5 = vector.shape_cast %4 : vector<8x1x8x128xf32> to vector<8x8x128xf32>
    %6 = vector.shape_cast %5 : vector<8x8x128xf32> to vector<64x128xf32>
    %7 = tpu.concatenate %3, %6 in 1 : vector<64x128xf32>, vector<64x128xf32> -> vector<64x256xf32>
    %cst = arith.constant dense<0.000000e+00> : vector<64xf32>
    %8 = vector.multi_reduction <add>, %7, %cst [1] : vector<64x256xf32> to vector<64xf32>
    %9 = vector.shape_cast %8 : vector<64xf32> to vector<64x1xf32>
    %cst_3 = arith.constant 2.560000e+02 : f32
    %10 = vector.broadcast %cst_3 : f32 to vector<64x1xf32>
    %11 = arith.divf %9, %10 : vector<64x1xf32>
    %12 = vector.broadcast %11 : vector<64x1xf32> to vector<64x256xf32>
    %13 = arith.subf %7, %12 : vector<64x256xf32>
    %14 = arith.mulf %13, %13 : vector<64x256xf32>
    %cst_4 = arith.constant dense<0.000000e+00> : vector<64xf32>
    %15 = vector.multi_reduction <add>, %14, %cst_4 [1] : vector<64x256xf32> to vector<64xf32>
    %16 = vector.shape_cast %15 : vector<64xf32> to vector<64x1xf32>
    %cst_5 = arith.constant 2.560000e+02 : f32
    %17 = vector.broadcast %cst_5 : f32 to vector<64x1xf32>
    %18 = arith.divf %16, %17 : vector<64x1xf32>
    %cst_6 = arith.constant 9.99999974E-6 : f32
    %19 = vector.broadcast %cst_6 : f32 to vector<64x1xf32>
    %20 = arith.addf %18, %19 : vector<64x1xf32>
    %21 = math.rsqrt %20 : vector<64x1xf32>
    %22 = vector.broadcast %21 : vector<64x1xf32> to vector<64x256xf32>
    %23 = arith.mulf %13, %22 : vector<64x256xf32>
    %c0_7 = arith.constant 0 : index
    %c0_8 = arith.constant 0 : index
    %24 = vector.load %arg2[%c0_7, %c0_8] : memref<256x128xf32, #tpu.memory_space<vmem>>, vector<256x128xf32>
    %cst_9 = arith.constant dense<0.000000e+00> : vector<64x128xf32>
    %25 = tpu.matmul %23, %24, %cst_9 {dimension_numbers = #tpu.dot_dimension_numbers<[1], [0], [0], [1], [0, 0, 1, 1], [], []>} : vector<64x256xf32>, vector<256x128xf32>, vector<64x128xf32> -> vector<64x128xf32>
    %c0_10 = arith.constant 0 : index
    %c0_11 = arith.constant 0 : index
    %26 = vector.load %arg3[%c0_10, %c0_11] : memref<1x128xf32, #tpu.memory_space<vmem>>, vector<1x128xf32>
    %27 = vector.broadcast %26 : vector<1x128xf32> to vector<64x128xf32>
    %28 = arith.addf %25, %27 : vector<64x128xf32>
    %c0_12 = arith.constant 0 : index
    %c0_13 = arith.constant 0 : index
    %29 = vector.load %arg4[%c0_12, %c0_13] : memref<64x128xf32, #tpu.memory_space<vmem>>, vector<64x128xf32>
    tpu.vector_store %arg4[%c0_12, %c0_13], %28 {strides = array<i32>} : memref<64x128xf32, #tpu.memory_space<vmem>>, vector<64x128xf32>,
    return
  }
  func.func @transform_0(%arg0: i32) -> (i32, i32, i32, i32) {
    %c0_i32 = arith.constant 0 : i32
    %c0_i32_0 = arith.constant 0 : i32
    %c0_i32_1 = arith.constant 0 : i32
    %c0_i32_2 = arith.constant 0 : i32
    return %arg0, %c0_i32, %c0_i32_0, %c0_i32_1 : i32, i32, i32, i32
  }
  func.func @transform_1(%arg0: i32) -> (i32, i32) {
    %c0_i32 = arith.constant 0 : i32
    %c0_i32_0 = arith.constant 0 : i32
    %c0_i32_1 = arith.constant 0 : i32
    return %c0_i32, %c0_i32_0 : i32, i32
  }
  func.func @transform_2(%arg0: i32) -> (i32, i32) {
    %c0_i32 = arith.constant 0 : i32
    %c0_i32_0 = arith.constant 0 : i32
    %c0_i32_1 = arith.constant 0 : i32
    return %c0_i32, %c0_i32_0 : i32, i32
  }
  func.func @transform_3(%arg0: i32) -> (i32, i32) {
    %c0_i32 = arith.constant 0 : i32
    %c0_i32_0 = arith.constant 0 : i32
    return %arg0, %c0_i32 : i32, i32
  }
}

</mosaic_0001>

<llo_original>
// kernel: patch_merging_forward.1
$region0: #{patch_merging_forward.1}
  #allocation0 [shape = 'u32[]', space=smem, size = 0x4, offset = 0x4, fixed_abs, tag = 'smem constant byte address 0x4 - core index']
  #allocation1 [shape = 'u32[144,128]{1,0:T(1,128)}', space=vmem, size = 0x12000, scoped, tag = 'internal scratch']
  %s0 = inlined_call_operand.vmem [shape: f32[16,2,8,128], index: 0, kind: input, shape index: {}]
  %s1 = inlined_call_operand.vmem [shape: f32[256,128], index: 1, kind: input, shape index: {}]
  %s2 = inlined_call_operand.vmem [shape: f32[1,128], index: 2, kind: input, shape index: {}]
  %s3 = inlined_call_operand.hbm [shape: f32[128,128], index: 3, kind: output, shape index: {}]
  %s4 = sld [smem:[#allocation0]]
  $region45: #{patch_merging_forward.1} parent=0
    _
  %s6 = ssub.s32 1, %s4
  %s7 = scalar_select 0, %s6, %s4
  $region1: #{patch_merging_forward.1} parent=0
    #allocation2 [shape = 'u8[65536]{0}', space=vmem, size = 0x10000, scoped, tag = 'output window, operand 0']
    #allocation3 [shape = 's32[2]{0}', space=sflag, size = 0x8, scoped, tag = 'scoped memory for patch_merging_forward.1']
    %8 = vsyncpa [#allocation3], 0
    %s9 = scalar_lea.sflag [#allocation3], 1
    %10 = vsyncpa %s9, 0
    loop: start=0, step=1, limit=4
    $region2: #{patch_merging_forward.1} parent=1 // loop_pre_header
      _
    $region3: #{patch_merging_forward.1} parent=1 // loop_header
      %s12 = sphi 0, %s16
      %p13 = scmp.ge.s32.totalorder %s12, 4
      %s22 = sphi 0, %s24
      %s25 = sphi 0, %s22
      %s26 = sphi 0, %s25
      %s42 = sphi 0, %s26
      %s46 = sphi 0, %s46
      %s48 = sphi 0, %s46
      %s49 = sphi 0, %s48
      %s63 = sphi 0, %s49
      %s67 = sphi 0, %s67
      %s69 = sphi 0, %s67
      %s70 = sphi 0, %s69
      %s84 = sphi 0, %s70
      %s90 = sphi 0, %s92
      %s93 = sphi 0, %s90
      %s94 = sphi 0, %s93
      %s110 = sphi 0, %s94
    $region4: #{patch_merging_forward.1} parent=1 // loop_header_branch
      %15 = sbr.rel (%p13) target = $region8
    $region5: #{patch_merging_forward.1} parent=1 // loop_body
      %s17 = ssub.s32 %s12, 1
      %s18 = ssub.s32 %s12, 2
      %s19 = sadd.s32 %s12, 1
      %s20 = ssub.s32 %s12, %s19
      %p21 = scmp.eq.s32.totalorder %s20, 0
      %s23 = sadd.s32 %s22, 1
      %s24 = scalar_select %p21, %s22, %s23
      %p27 = pneg %p21
      %p28 = scmp.eq.s32.totalorder %s12, 1
      %p29 = por %p27, %p28
      %p30 = scmp.ne.s32.totalorder %s22, %s25
      %p31 = scmp.eq.s32.totalorder %s12, 0
      %p32 = por %p30, %p31
      %p33 = scmp.ne.s32.totalorder %s22, %s25
      %p34 = scmp.eq.s32.totalorder %s17, 1
      %p35 = por %p33, %p34
      %p36 = scmp.ne.s32.totalorder %s25, %s26
      %p37 = scmp.eq.s32.totalorder %s17, 0
      %p38 = por %p36, %p37
      %p39 = scmp.ne.s32.totalorder %s25, %s26
      %p40 = scmp.eq.s32.totalorder %s18, 1
      %p41 = por %p39, %p40
      %p43 = scmp.ne.s32.totalorder %s26, %s42
      %p44 = scmp.eq.s32.totalorder %s18, 0
      %p45 = por %p43, %p44
      %s47 = sadd.s32 %s46, 1
      %p50 = scmp.eq.s32.totalorder %s12, 1
      %p51 = scmp.ne.s32.totalorder %s46, %s48
      %p52 = scmp.eq.s32.totalorder %s12, 0
      %p53 = por %p51, %p52
      %p54 = scmp.ne.s32.totalorder %s46, %s48
      %p55 = scmp.eq.s32.totalorder %s17, 1
      %p56 = por %p54, %p55
      %p57 = scmp.ne.s32.totalorder %s48, %s49
      %p58 = scmp.eq.s32.totalorder %s17, 0
      %p59 = por %p57, %p58
      %p60 = scmp.ne.s32.totalorder %s48, %s49
      %p61 = scmp.eq.s32.totalorder %s18, 1
      %p62 = por %p60, %p61
      %p64 = scmp.ne.s32.totalorder %s49, %s63
      %p65 = scmp.eq.s32.totalorder %s18, 0
      %p66 = por %p64, %p65
      %s68 = sadd.s32 %s67, 1
      %p71 = scmp.eq.s32.totalorder %s12, 1
      %p72 = scmp.ne.s32.totalorder %s67, %s69
      %p73 = scmp.eq.s32.totalorder %s12, 0
      %p74 = por %p72, %p73
      %p75 = scmp.ne.s32.totalorder %s67, %s69
      %p76 = scmp.eq.s32.totalorder %s17, 1
      %p77 = por %p75, %p76
      %p78 = scmp.ne.s32.totalorder %s69, %s70
      %p79 = scmp.eq.s32.totalorder %s17, 0
      %p80 = por %p78, %p79
      %p81 = scmp.ne.s32.totalorder %s69, %s70
      %p82 = scmp.eq.s32.totalorder %s18, 1
      %p83 = por %p81, %p82
      %p85 = scmp.ne.s32.totalorder %s70, %s84
      %p86 = scmp.eq.s32.totalorder %s18, 0
      %p87 = por %p85, %p86
      %s88 = ssub.s32 %s12, %s19
      %p89 = scmp.eq.s32.totalorder %s88, 0
      %s91 = sadd.s32 %s90, 1
      %s92 = scalar_select %p89, %s90, %s91
      %p95 = pneg %p89
      %p96 = scmp.eq.s32.totalorder %s12, 1
      %p97 = por %p95, %p96
      %p98 = scmp.ne.s32.totalorder %s90, %s93
      %p99 = scmp.eq.s32.totalorder %s12, 0
      %p100 = por %p98, %p99
      %p101 = scmp.ne.s32.totalorder %s90, %s93
      %p102 = scmp.eq.s32.totalorder %s17, 1
      %p103 = por %p101, %p102
      %p104 = scmp.ne.s32.totalorder %s93, %s94
      %p105 = scmp.eq.s32.totalorder %s17, 0
      %p106 = por %p104, %p105
      %p107 = scmp.ne.s32.totalorder %s93, %s94
      %p108 = scmp.eq.s32.totalorder %s18, 1
      %p109 = por %p107, %p108
      %p111 = scmp.ne.s32.totalorder %s94, %s110
      %p112 = scmp.eq.s32.totalorder %s18, 0
      %p113 = por %p111, %p112
      %p114 = scmp.le.s32.totalorder 1, %s12
      %p115 = scmp.lt.s32.totalorder %s12, 3
      %p116 = pnand %p114, %p115
      %p117 = pneg %p116
      // Predicated region
      $region9: #{patch_merging_forward.1} parent=5 // pred_check
        _
      $region10: #{patch_merging_forward.1} parent=5 // pred_check_branch
        %119 = sbr.rel (%p116) target = $region12
      $region11: #{patch_merging_forward.1} parent=5 // pred_region
        %s120 = ssub.s32 %s12, 1
        // Predicated region
        $region13: #{patch_merging_forward.1} parent=11 // pred_check
          %p121 = pneg %p59
        $region14: #{patch_merging_forward.1} parent=11 // pred_check_branch
          %123 = sbr.rel (%p121) target = $region16
        $region15: #{patch_merging_forward.1} parent=11 // pred_region
          _
        $region16: #{patch_merging_forward.1} parent=11 // pred_fallthru
          _
        // Predicated region
        $region17: #{patch_merging_forward.1} parent=11 // pred_check
          %p124 = pneg %p80
        $region18: #{patch_merging_forward.1} parent=11 // pred_check_branch
          %126 = sbr.rel (%p124) target = $region20
        $region19: #{patch_merging_forward.1} parent=11 // pred_region
          _
        $region20: #{patch_merging_forward.1} parent=11 // pred_fallthru
          _
      $region12: #{patch_merging_forward.1} parent=5 // pred_fallthru
        _
      %p127 = scmp.lt.s32.totalorder %s12, 2
      // Predicated region
      $region21: #{patch_merging_forward.1} parent=5 // pred_check
        %p128 = pneg %p127
      $region22: #{patch_merging_forward.1} parent=5 // pred_check_branch
        %130 = sbr.rel (%p128) target = $region24
      $region23: #{patch_merging_forward.1} parent=5 // pred_region
        // Predicated region
        $region25: #{patch_merging_forward.1} parent=23 // pred_check
          %p131 = pneg %p32
        $region26: #{patch_merging_forward.1} parent=23 // pred_check_branch
          %133 = sbr.rel (%p131) target = $region28
        $region27: #{patch_merging_forward.1} parent=23 // pred_region
          %s134 = smul.u32 8, %s12
          %p135 = scmp.lt.s32.totalorder %s134, 15
          %s136 = scalar_select %p135, %s134, 15
          %s137 = smul.addr %s136, 2
          %s138 = smul.addr %s137, 8
          %s139 = scalar_lea.vmem %s0, %s138
          %s140 = smul.u32 8, %s12
        $region28: #{patch_merging_forward.1} parent=23 // pred_fallthru
          _
      $region24: #{patch_merging_forward.1} parent=5 // pred_fallthru
        _
      %p141 = scmp.le.s32.totalorder 1, %s12
      %p142 = scmp.lt.s32.totalorder %s12, 3
      %p143 = pnand %p141, %p142
      %p144 = pneg %p143
      // Predicated region
      $region29: #{patch_merging_forward.1} parent=5 // pred_check
        _
      $region30: #{patch_merging_forward.1} parent=5 // pred_check_branch
        %146 = sbr.rel (%p143) target = $region32
      $region31: #{patch_merging_forward.1} parent=5 // pred_region
        %s147 = ssub.s32 %s12, 1
        %s148 = smul.u32 8, %s17
        %p149 = scmp.lt.s32.totalorder %s148, 15
        %s150 = scalar_select %p149, %s148, 15
        %s151 = smul.addr %s150, 2
        %s152 = smul.addr %s151, 8
        %s153 = scalar_lea.vmem %s0, %s152
        %p154 = pneg %p38
        %p155 = pneg %p35
        %p156 = pneg %p59
        %p157 = pneg %p56
        %p158 = pneg %p80
        %p159 = pneg %p77
        %p160 = pneg %p106
        %p161 = pneg %p103
        %s162 = sand.u32 %s93, 1
        %s163 = scalar_lea.sflag [#allocation3], %s162
        %s164 = sand.u32 %s93, 1
        %s165 = smul.addr %s164, 64
        %s166 = scalar_lea.vmem [#allocation2], %s165
        %s167 = smul.u32 8, %s17
        %p168 = scmp.lt.s32.totalorder %s167, 15
        %s169 = scalar_select %p168, %s167, 15
        %s170 = smul.addr %s169, 2
        %s171 = smul.addr %s170, 8
        %s172 = scalar_lea.vmem %s0, %s171
        %s173 = smul.u32 8, %s17
        %s174 = smul.u32 8, %s17
        %v175 = vld [vmem:[%s172] sm:$0xff]
        %v176 = vld [vmem:[%s172 + $0x8] sm:$0xff]
        %v177 = vld [vmem:[%s172 + $0x10] sm:$0xff]
        %v178 = vld [vmem:[%s172 + $0x18] sm:$0xff]
        %v179 = vld [vmem:[%s172 + $0x20] sm:$0xff]
        %v180 = vld [vmem:[%s172 + $0x28] sm:$0xff]
        %v181 = vld [vmem:[%s172 + $0x30] sm:$0xff]
        %v182 = vld [vmem:[%s172 + $0x38] sm:$0xff]
        %v183 = vld [vmem:[%s172 + $0x40] sm:$0xff]
        %v184 = vld [vmem:[%s172 + $0x48] sm:$0xff]
        %v185 = vld [vmem:[%s172 + $0x50] sm:$0xff]
        %v186 = vld [vmem:[%s172 + $0x58] sm:$0xff]
        %v187 = vld [vmem:[%s172 + $0x60] sm:$0xff]
        %v188 = vld [vmem:[%s172 + $0x68] sm:$0xff]
        %v189 = vld [vmem:[%s172 + $0x70] sm:$0xff]
        %v190 = vld [vmem:[%s172 + $0x78] sm:$0xff]
        %v191 = vadd.f32 %v175, %v176
        %192 = vadd.xlane.f32.xlu0 %v191
        %v193 = vpop.xlane.xlu0 %192
        %v194 = vadd.f32 %v177, %v178
        %195 = vadd.xlane.f32.xlu0 %v194
        %v196 = vpop.xlane.xlu0 %195
        %v197 = vadd.f32 %v179, %v180
        %198 = vadd.xlane.f32.xlu0 %v197
        %v199 = vpop.xlane.xlu0 %198
        %v200 = vadd.f32 %v181, %v182
        %201 = vadd.xlane.f32.xlu0 %v200
        %v202 = vpop.xlane.xlu0 %201
        %v203 = vadd.f32 %v183, %v184
        %204 = vadd.xlane.f32.xlu0 %v203
        %v205 = vpop.xlane.xlu0 %204
        %v206 = vadd.f32 %v185, %v186
        %207 = vadd.xlane.f32.xlu0 %v206
        %v208 = vpop.xlane.xlu0 %207
        %v209 = vadd.f32 %v187, %v188
        %210 = vadd.xlane.f32.xlu0 %v209
        %v211 = vpop.xlane.xlu0 %210
        %v212 = vadd.f32 %v189, %v190
        %213 = vadd.xlane.f32.xlu0 %v212
        %v214 = vpop.xlane.xlu0 %213
        %v215 = vrcp.pop 256.0
        %v216 = vmul.f32 %v193, %v215
        %v217 = vmul.f32 %v196, %v215
        %v218 = vmul.f32 %v199, %v215
        %v219 = vmul.f32 %v202, %v215
        %v220 = vmul.f32 %v205, %v215
        %v221 = vmul.f32 %v208, %v215
        %v222 = vmul.f32 %v211, %v215
        %v223 = vmul.f32 %v214, %v215
        %v224 = vsub.f32 %v175, %v216
        %v225 = vsub.f32 %v176, %v216
        %v226 = vsub.f32 %v177, %v217
        %v227 = vsub.f32 %v178, %v217
        %v228 = vsub.f32 %v179, %v218
        %v229 = vsub.f32 %v180, %v218
        %v230 = vsub.f32 %v181, %v219
        %v231 = vsub.f32 %v182, %v219
        %v232 = vsub.f32 %v183, %v220
        %v233 = vsub.f32 %v184, %v220
        %v234 = vsub.f32 %v185, %v221
        %v235 = vsub.f32 %v186, %v221
        %v236 = vsub.f32 %v187, %v222
        %v237 = vsub.f32 %v188, %v222
        %v238 = vsub.f32 %v189, %v223
        %v239 = vsub.f32 %v190, %v223
        %v240 = vmul.f32 %v224, %v224
        %v241 = vmul.f32 %v225, %v225
        %v242 = vmul.f32 %v226, %v226
        %v243 = vmul.f32 %v227, %v227
        %v244 = vmul.f32 %v228, %v228
        %v245 = vmul.f32 %v229, %v229
        %v246 = vmul.f32 %v230, %v230
        %v247 = vmul.f32 %v231, %v231
        %v248 = vmul.f32 %v232, %v232
        %v249 = vmul.f32 %v233, %v233
        %v250 = vmul.f32 %v234, %v234
        %v251 = vmul.f32 %v235, %v235
        %v252 = vmul.f32 %v236, %v236
        %v253 = vmul.f32 %v237, %v237
        %v254 = vmul.f32 %v238, %v238
        %v255 = vmul.f32 %v239, %v239
        %v256 = vadd.f32 %v240, %v241
        %257 = vadd.xlane.f32.xlu0 %v256
        %v258 = vpop.xlane.xlu0 %257
        %v259 = vadd.f32 %v242, %v243
        %260 = vadd.xlane.f32.xlu0 %v259
        %v261 = vpop.xlane.xlu0 %260
        %v262 = vadd.f32 %v244, %v245
        %263 = vadd.xlane.f32.xlu0 %v262
        %v264 = vpop.xlane.xlu0 %263
        %v265 = vadd.f32 %v246, %v247
        %266 = vadd.xlane.f32.xlu0 %v265
        %v267 = vpop.xlane.xlu0 %266
        %v268 = vadd.f32 %v248, %v249
        %269 = vadd.xlane.f32.xlu0 %v268
        %v270 = vpop.xlane.xlu0 %269
        %v271 = vadd.f32 %v250, %v251
        %272 = vadd.xlane.f32.xlu0 %v271
        %v273 = vpop.xlane.xlu0 %272
        %v274 = vadd.f32 %v252, %v253
        %275 = vadd.xlane.f32.xlu0 %v274
        %v276 = vpop.xlane.xlu0 %275
        %v277 = vadd.f32 %v254, %v255
        %278 = vadd.xlane.f32.xlu0 %v277
        %v279 = vpop.xlane.xlu0 %278
        %v280 = vmul.f32 %v258, %v215
        %v281 = vmul.f32 %v261, %v215
        %v282 = vmul.f32 %v264, %v215
        %v283 = vmul.f32 %v267, %v215
        %v284 = vmul.f32 %v270, %v215
        %v285 = vmul.f32 %v273, %v215
        %v286 = vmul.f32 %v276, %v215
        %v287 = vmul.f32 %v279, %v215
        %v288 = vadd.f32 %v280, 1e-05
        %v289 = vadd.f32 %v281, 1e-05
        %v290 = vadd.f32 %v282, 1e-05
        %v291 = vadd.f32 %v283, 1e-05
        %v292 = vadd.f32 %v284, 1e-05
        %v293 = vadd.f32 %v285, 1e-05
        %v294 = vadd.f32 %v286, 1e-05
        %v295 = vadd.f32 %v287, 1e-05
        %v296 = vrsqrt.pop %v288
        %v297 = vrsqrt.pop %v289
        %v298 = vrsqrt.pop %v290
        %v299 = vrsqrt.pop %v291
        %v300 = vrsqrt.pop %v292
        %v301 = vrsqrt.pop %v293
        %v302 = vrsqrt.pop %v294
        %v303 = vrsqrt.pop %v295
        %v304 = vmul.f32 %v224, %v296
        %v305 = vmul.f32 %v225, %v296
        %v306 = vmul.f32 %v226, %v297
        %v307 = vmul.f32 %v227, %v297
        %v308 = vmul.f32 %v228, %v298
        %v309 = vmul.f32 %v229, %v298
        %v310 = vmul.f32 %v230, %v299
        %v311 = vmul.f32 %v231, %v299
        %v312 = vmul.f32 %v232, %v300
        %v313 = vmul.f32 %v233, %v300
        %v314 = vmul.f32 %v234, %v301
        %v315 = vmul.f32 %v235, %v301
        %v316 = vmul.f32 %v236, %v302
        %v317 = vmul.f32 %v237, %v302
        %v318 = vmul.f32 %v238, %v303
        %v319 = vmul.f32 %v239, %v303
        %v320 = vld [vmem:[%s1] sm:$0xff]
        %v321 = vld [vmem:[%s1 + $0x8] sm:$0xff]
        %v322 = vld [vmem:[%s1 + $0x10] sm:$0xff]
        %v323 = vld [vmem:[%s1 + $0x18] sm:$0xff]
        %v324 = vld [vmem:[%s1 + $0x20] sm:$0xff]
        %v325 = vld [vmem:[%s1 + $0x28] sm:$0xff]
        %v326 = vld [vmem:[%s1 + $0x30] sm:$0xff]
        %v327 = vld [vmem:[%s1 + $0x38] sm:$0xff]
        %v328 = vld [vmem:[%s1 + $0x40] sm:$0xff]
        %v329 = vld [vmem:[%s1 + $0x48] sm:$0xff]
        %v330 = vld [vmem:[%s1 + $0x50] sm:$0xff]
        %v331 = vld [vmem:[%s1 + $0x58] sm:$0xff]
        %v332 = vld [vmem:[%s1 + $0x60] sm:$0xff]
        %v333 = vld [vmem:[%s1 + $0x68] sm:$0xff]
        %v334 = vld [vmem:[%s1 + $0x70] sm:$0xff]
        %v335 = vld [vmem:[%s1 + $0x78] sm:$0xff]
        %v336 = vld [vmem:[%s1 + $0x80] sm:$0xff]
        %v337 = vld [vmem:[%s1 + $0x88] sm:$0xff]
        %v338 = vld [vmem:[%s1 + $0x90] sm:$0xff]
        %v339 = vld [vmem:[%s1 + $0x98] sm:$0xff]
        %v340 = vld [vmem:[%s1 + $0xa0] sm:$0xff]
        %v341 = vld [vmem:[%s1 + $0xa8] sm:$0xff]
        %v342 = vld [vmem:[%s1 + $0xb0] sm:$0xff]
        %v343 = vld [vmem:[%s1 + $0xb8] sm:$0xff]
        %v344 = vld [vmem:[%s1 + $0xc0] sm:$0xff]
        %v345 = vld [vmem:[%s1 + $0xc8] sm:$0xff]
        %v346 = vld [vmem:[%s1 + $0xd0] sm:$0xff]
        %v347 = vld [vmem:[%s1 + $0xd8] sm:$0xff]
        %v348 = vld [vmem:[%s1 + $0xe0] sm:$0xff]
        %v349 = vld [vmem:[%s1 + $0xe8] sm:$0xff]
        %v350 = vld [vmem:[%s1 + $0xf0] sm:$0xff]
        %v351 = vld [vmem:[%s1 + $0xf8] sm:$0xff]
        %v352 = vld [vmem:[%s2] sm:$0x1]
        %v354 = vlaneseq
        %v355 = vshrl.u32 %v354, 7
        %v356 = vsub.s32 0, %v355
        %v357 = vrot.slane %v352, %v356
        %359 = vmatprep.subr.mxu0 0.0
        %360 = vmatpush1.msra.mxu0 %v320
        %361 = vmatprep.subr.mxu0 0.0
        %362 = vmatpush1.msra.mxu0 %v321
        %363 = vmatprep.subr.mxu0 0.0
        %364 = vmatpush1.msra.mxu0 %v322
        %365 = vmatprep.subr.mxu0 0.0
        %366 = vmatpush1.msra.mxu0 %v323
        %367 = vmatprep.subr.mxu0 0.0
        %368 = vmatpush1.msra.mxu0 %v324
        %369 = vmatprep.subr.mxu0 0.0
        %370 = vmatpush1.msra.mxu0 %v325
        %371 = vmatprep.subr.mxu0 0.0
        %372 = vmatpush1.msra.mxu0 %v326
        %373 = vmatprep.subr.mxu0 0.0
        %374 = vmatpush1.msra.mxu0 %v327
        %375 = vmatprep.subr.mxu0 0.0
        %376 = vmatpush1.msra.mxu0 %v328
        %377 = vmatprep.subr.mxu0 0.0
        %378 = vmatpush1.msra.mxu0 %v329
        %379 = vmatprep.subr.mxu0 0.0
        %380 = vmatpush1.msra.mxu0 %v330
        %381 = vmatprep.subr.mxu0 0.0
        %382 = vmatpush1.msra.mxu0 %v331
        %383 = vmatprep.subr.mxu0 0.0
        %384 = vmatpush1.msra.mxu0 %v332
        %385 = vmatprep.subr.mxu0 0.0
        %386 = vmatpush1.msra.mxu0 %v333
        %387 = vmatprep.subr.mxu0 0.0
        %388 = vmatpush1.msra.mxu0 %v334
        %389 = vmatprep.subr.mxu0 0.0
        %390 = vmatpush1.msra.mxu0 %v335
        %391 = vmatprep.subr.mxu0 0.0
        %392 = vmatpush1.msra.mxu0 %v336
        %393 = vmatprep.subr.mxu0 0.0
        %394 = vmatpush1.msra.mxu0 %v337
        %395 = vmatprep.subr.mxu0 0.0
        %396 = vmatpush1.msra.mxu0 %v338
        %397 = vmatprep.subr.mxu0 0.0
        %398 = vmatpush1.msra.mxu0 %v339
        %399 = vmatprep.subr.mxu0 0.0
        %400 = vmatpush1.msra.mxu0 %v340
        %401 = vmatprep.subr.mxu0 0.0
        %402 = vmatpush1.msra.mxu0 %v341
        %403 = vmatprep.subr.mxu0 0.0
        %404 = vmatpush1.msra.mxu0 %v342
        %405 = vmatprep.subr.mxu0 0.0
        %406 = vmatpush1.msra.mxu0 %v343
        %407 = vmatprep.subr.mxu0 0.0
        %408 = vmatpush1.msra.mxu0 %v344
        %409 = vmatprep.subr.mxu0 0.0
        %410 = vmatpush1.msra.mxu0 %v345
        %411 = vmatprep.subr.mxu0 0.0
        %412 = vmatpush1.msra.mxu0 %v346
        %413 = vmatprep.subr.mxu0 0.0
        %414 = vmatpush1.msra.mxu0 %v347
        %415 = vmatprep.subr.mxu0 0.0
        %416 = vmatpush1.msra.mxu0 %v348
        %417 = vmatprep.subr.mxu0 0.0
        %418 = vmatpush1.msra.mxu0 %v349
        %419 = vmatprep.subr.mxu0 0.0
        %420 = vmatpush1.msra.mxu0 %v350
        %421 = vmatprep.subr.mxu0 0.0
        %422 = vmatpush1.msra.mxu0 %v351
        %423 = vmatprep.mubr.f32.mxu0 %v305
        %424 = vmatmul.mubr.f32.gmra.mrb[0].mxu0 %v304
        %v425 = vpop.f32.mrb[0].mxu0
        %v426 = vadd.f32 %v357, %v425
        %v427 = vpop.f32.mrb[0].mxu0
        %428 = vmatprep.mubr.f32.mxu0 %v307
        %429 = vmatmul.mubr.f32.gmra.mrb[0].mxu0 %v306
        %v430 = vpop.f32.mrb[0].mxu0
        %v431 = vadd.f32 %v357, %v430
        %v432 = vpop.f32.mrb[0].mxu0
        %433 = vmatprep.mubr.f32.mxu0 %v309
        %434 = vmatmul.mubr.f32.gmra.mrb[0].mxu0 %v308
        %v435 = vpop.f32.mrb[0].mxu0
        %v436 = vadd.f32 %v357, %v435
        %v437 = vpop.f32.mrb[0].mxu0
        %438 = vmatprep.mubr.f32.mxu0 %v311
        %439 = vmatmul.mubr.f32.gmra.mrb[0].mxu0 %v310
        %v440 = vpop.f32.mrb[0].mxu0
        %v441 = vadd.f32 %v357, %v440
        %v442 = vpop.f32.mrb[0].mxu0
        %443 = vmatprep.mubr.f32.mxu0 %v313
        %444 = vmatmul.mubr.f32.gmra.mrb[0].mxu0 %v312
        %v445 = vpop.f32.mrb[0].mxu0
        %v446 = vadd.f32 %v357, %v445
        %v447 = vpop.f32.mrb[0].mxu0
        %448 = vmatprep.mubr.f32.mxu0 %v315
        %449 = vmatmul.mubr.f32.gmra.mrb[0].mxu0 %v314
        %v450 = vpop.f32.mrb[0].mxu0
        %v451 = vadd.f32 %v357, %v450
        %v452 = vpop.f32.mrb[0].mxu0
        %453 = vmatprep.mubr.f32.mxu0 %v317
        %454 = vmatmul.mubr.f32.gmra.mrb[0].mxu0 %v316
        %v455 = vpop.f32.mrb[0].mxu0
        %v456 = vadd.f32 %v357, %v455
        %v457 = vpop.f32.mrb[0].mxu0
        %458 = vmatprep.mubr.f32.mxu0 %v319
        %459 = vmatmul.mubr.f32.gmra.mrb[0].mxu0 %v318
        %v460 = vpop.f32.mrb[0].mxu0
        %v461 = vadd.f32 %v357, %v460
        %v462 = vpop.f32.mrb[0].mxu0
        %463 = vdwg.mxu0
        %464 = vst [vmem:[%s166] sm:$0xff] %v426
        %465 = vst [vmem:[%s166 + $0x8] sm:$0xff] %v431
        %466 = vst [vmem:[%s166 + $0x10] sm:$0xff] %v436
        %467 = vst [vmem:[%s166 + $0x18] sm:$0xff] %v441
        %468 = vst [vmem:[%s166 + $0x20] sm:$0xff] %v446
        %469 = vst [vmem:[%s166 + $0x28] sm:$0xff] %v451
        %470 = vst [vmem:[%s166 + $0x30] sm:$0xff] %v456
        %471 = vst [vmem:[%s166 + $0x38] sm:$0xff] %v461
        %s472 = sand.u32 %s93, 1
        %s473 = scalar_lea.sflag [#allocation3], %s472
        %s474 = sand.u32 %s93, 1
        %s475 = smul.addr %s474, 64
        %s476 = scalar_lea.vmem [#allocation2], %s475
        // Predicated region
        $region33: #{patch_merging_forward.1} parent=31 // pred_check
          %p477 = pneg %p103
        $region34: #{patch_merging_forward.1} parent=31 // pred_check_branch
          %479 = sbr.rel (%p477) target = $region36
        $region35: #{patch_merging_forward.1} parent=31 // pred_region
          %s480 = smul.u32 8, %s17
          %s482 = ssub.s32 1024, 1024
          %483 = vsyncadd %s473, %s482
          %s484 = smul.addr %s480, 128
          %s485 = scalar_lea.hbm %s3, %s484
          %s486 = sshll.u32 %s476, 4
          %s487 = int_to_ptr.vmem [resolvable:$true] %s486
          %492 = dma.vmem_to_hbm [thread:$0]  %s487, 1024, %s485, %s473, 128, 128, 8
        $region36: #{patch_merging_forward.1} parent=31 // pred_fallthru
          _
      $region32: #{patch_merging_forward.1} parent=5 // pred_fallthru
        _
      %p493 = scmp.le.s32.totalorder 2, %s12
      // Predicated region
      $region37: #{patch_merging_forward.1} parent=5 // pred_check
        %p494 = pneg %p493
      $region38: #{patch_merging_forward.1} parent=5 // pred_check_branch
        %496 = sbr.rel (%p494) target = $region40
      $region39: #{patch_merging_forward.1} parent=5 // pred_region
        %s497 = ssub.s32 %s12, 2
        // Predicated region
        $region41: #{patch_merging_forward.1} parent=39 // pred_check
          %p498 = pneg %p109
        $region42: #{patch_merging_forward.1} parent=39 // pred_check_branch
          %500 = sbr.rel (%p498) target = $region44
        $region43: #{patch_merging_forward.1} parent=39 // pred_region
          %s501 = sand.u32 %s94, 1
          %s502 = scalar_lea.sflag [#allocation3], %s501
          %s503 = sand.u32 %s94, 1
          %s504 = smul.addr %s503, 64
          %s505 = scalar_lea.vmem [#allocation2], %s504
          %506 = dma.done %s502, 1024
        $region44: #{patch_merging_forward.1} parent=39 // pred_fallthru
          _
      $region40: #{patch_merging_forward.1} parent=5 // pred_fallthru
        _
    $region6: #{patch_merging_forward.1} parent=1 // loop_footer
      %s16 = sadd.s32 1, %s12
    $region7: #{patch_merging_forward.1} parent=1 // loop_footer_branch
      %11 = sbr.rel target = $region3
    $region8: #{patch_merging_forward.1} parent=1 // loop_exit
      _
    %507 = vsyncpa [#allocation3], 1
    %s508 = scalar_lea.sflag [#allocation3], 1
    %509 = vsyncpa %s508, 1

</llo_original>
